<compile_context>
chip_gen: v5e
topology: v5e:2x2
jax: 0.10.0
libtpu: 0.0.40
codegen_flags: <defaults>
</compile_context>

<pallas_src>
import functools

import jax
import jax.numpy as jnp
from jax.experimental import pallas as pl
from jax.experimental.pallas import tpu as pltpu


# ---------------------------------------------------------------------------
# Kernel body
# ---------------------------------------------------------------------------

def _attention_body(q, k, v, scale, mask=None, use_bf16_matmul=False):
    """q:(TQ,Dk)  k:(Dk,Lk)  v:(Lk,Dv)  mask:(TQ,Lk) bool/int or None."""
    # Fold 1/sqrt(d_k) into q: a (TQ x Dk) multiply instead of (TQ x Lk).
    q_scaled = q * jnp.asarray(scale, q.dtype)
    if use_bf16_matmul and q.dtype == jnp.float32:
        q_scaled = q_scaled.astype(jnp.bfloat16)
        k = k.astype(jnp.bfloat16)
    scores = jnp.dot(q_scaled, k, preferred_element_type=jnp.float32)  # (TQ,Lk) f32
    if mask is not None:
        pred = mask if mask.dtype == jnp.bool_ else (mask != 0)
        scores = jnp.where(pred, jnp.float32(-1e9), scores)
    m = jnp.max(scores, axis=-1, keepdims=True)
    e = jnp.exp(scores - m)
    s = jnp.sum(e, axis=-1, keepdims=True)
    # Exact reciprocal (EUP slot) + broadcast multiply instead of a VALU divide.
    inv = pl.reciprocal(s, approx=False)
    attn = e * inv
    # Second matmul: cast probabilities down so bf16 v hits the fast MXU path.
    v_mm = v
    if use_bf16_matmul and v.dtype == jnp.float32:
        v_mm = v.astype(jnp.bfloat16)
    ctx = jnp.dot(attn.astype(v_mm.dtype), v_mm, preferred_element_type=jnp.float32)
    return ctx, attn


def _sdpa_kernel_nomask(q_ref, k_ref, v_ref, ctx_ref, attn_ref, *,
                        scale, use_bf16_matmul):
    ctx, attn = _attention_body(q_ref[0], k_ref[0], v_ref[0], scale,
                                use_bf16_matmul=use_bf16_matmul)
    ctx_ref[0] = ctx.astype(ctx_ref.dtype)
    attn_ref[0] = attn.astype(attn_ref.dtype)


def _sdpa_kernel_mask(q_ref, k_ref, v_ref, mask_ref, ctx_ref, attn_ref, *,
                      scale, use_bf16_matmul):
    ctx, attn = _attention_body(q_ref[0], k_ref[0], v_ref[0], scale,
                                mask=mask_ref[0],
                                use_bf16_matmul=use_bf16_matmul)
    ctx_ref[0] = ctx.astype(ctx_ref.dtype)
    attn_ref[0] = attn.astype(attn_ref.dtype)


# ---------------------------------------------------------------------------
# VMEM budgeting helpers
# ---------------------------------------------------------------------------

def _vmem_capacity_bytes():
    """Physical per-core VMEM capacity (conservative fallback = v7x's 64 MiB)."""
    try:
        cap = getattr(pltpu.get_tpu_info(), "vmem_capacity_bytes", None)
        if cap:
            return int(cap)
    except Exception:
        pass
    return 64 * 1024 * 1024


def _step_footprint_bytes(tq, dk, lk, dv, in_itemsize, out_itemsize, mask_itemsize):
    """Approx per-step resident VMEM bytes (double-buffered blocks + f32 temps)."""
    kv_resident = 2 * (dk * lk + lk * dv) * in_itemsize          # K, V blocks (x2 bufs)
    q_blocks = 2 * tq * dk * in_itemsize
    ctx_blocks = 2 * tq * dv * out_itemsize
    attn_blocks = 2 * tq * lk * out_itemsize
    mask_blocks = 2 * tq * lk * mask_itemsize
    temps = 2 * tq * lk * 4                                       # f32 scores + exp
    return kv_resident + q_blocks + ctx_blocks + attn_blocks + mask_blocks + temps


def _choose_q_tile(lq, fits):
    """Largest q-tile (divisor of Lq, incl. Lq itself) that fits the VMEM budget."""
    cands = sorted({t for t in (1024, 512, 256, 128) if t <= lq and lq % t == 0}
                   | {lq}, reverse=True)
    for t in cands:
        if fits(t):
            return t
    # Nothing fits the budget (huge Lk): take the smallest candidate anyway.
    return cands[-1]


def _vmem_limit_bytes(footprint, capacity):
    """Need-based scoped-VMEM limit: footprint + ~50% headroom, < physical."""
    limit = int(footprint * 1.5)
    limit = max(limit, 16 * 1024 * 1024)
    limit = min(limit, (capacity * 3) // 4)
    return limit


# ---------------------------------------------------------------------------
# Wrapper
# ---------------------------------------------------------------------------

def scaled_dot_product_attention(q, k, v, mask=None, *,
                                 allow_bf16_matmul=False, q_tile=None):
    """q: [B,H,Lq,Dk], k: [B,H,Dk,Lk], v: [B,H,Lk,Dv], mask: [B,H,Lq,Lk] or None."""
    B, H, Lq, Dk = q.shape
    Lk = k.shape[-1]
    Dv = v.shape[-1]
    BH = B * H

    qf = q.reshape(BH, Lq, Dk)
    kf = k.reshape(BH, Dk, Lk)
    vf = v.reshape(BH, Lk, Dv)
    # No dtype conversion of the mask: bool is already 1 byte/element, and an
    # astype here would add a full extra HBM read+write pass.
    mf = mask.reshape(BH, Lq, Lk) if mask is not None else None

    in_itemsize = jnp.dtype(q.dtype).itemsize
    out_itemsize = jnp.dtype(q.dtype).itemsize
    mask_itemsize = jnp.dtype(mf.dtype).itemsize if mf is not None else 0

    capacity = _vmem_capacity_bytes()
    budget = capacity // 2   # ~32 MiB on v7x, ~64 MiB on v5e/v6e

    def fits(t):
        return _step_footprint_bytes(t, Dk, Lk, Dv, in_itemsize, out_itemsize,
                                     mask_itemsize) <= budget

    TQ = q_tile if q_tile is not None else _choose_q_tile(Lq, fits)
    assert Lq % TQ == 0, f"q_tile {TQ} must divide Lq {Lq}"
    nq = Lq // TQ
    footprint = _step_footprint_bytes(TQ, Dk, Lk, Dv, in_itemsize, out_itemsize,
                                      mask_itemsize)

    scale = 1.0 / (Dk ** 0.5)

    in_specs = [
        pl.BlockSpec((1, TQ, Dk), lambda b, qi: (b, qi, 0)),
        # K / V block index is independent of the q-tile axis -> stays resident,
        # no re-DMA while iterating over q tiles of the same head (the qi axis is
        # marked "arbitrary" below so megacore cannot split it and break this).
        pl.BlockSpec((1, Dk, Lk), lambda b, qi: (b, 0, 0)),
        pl.BlockSpec((1, Lk, Dv), lambda b, qi: (b, 0, 0)),
    ]
    args = [qf, kf, vf]

    if mf is None:
        kernel = functools.partial(_sdpa_kernel_nomask, scale=scale,
                                   use_bf16_matmul=allow_bf16_matmul)
    else:
        in_specs.append(pl.BlockSpec((1, TQ, Lk), lambda b, qi: (b, qi, 0)))
        args.append(mf)
        kernel = functools.partial(_sdpa_kernel_mask, scale=scale,
                                   use_bf16_matmul=allow_bf16_matmul)

    out_shapes = (
        jax.ShapeDtypeStruct((BH, Lq, Dv), q.dtype),   # context
        jax.ShapeDtypeStruct((BH, Lq, Lk), q.dtype),   # attn (module returns it)
    )
    out_specs = (
        pl.BlockSpec((1, TQ, Dv), lambda b, qi: (b, qi, 0)),
        pl.BlockSpec((1, TQ, Lk), lambda b, qi: (b, qi, 0)),
    )

    bytes_accessed = (qf.size * in_itemsize + kf.size * in_itemsize
                      + vf.size * in_itemsize
                      + (mf.size * mask_itemsize if mf is not None else 0)
                      + BH * Lq * Dv * out_itemsize
                      + BH * Lq * Lk * out_itemsize)
    cost = pl.CostEstimate(
        flops=2 * BH * Lq * Lk * (Dk + Dv),
        transcendentals=BH * Lq * Lk,
        bytes_accessed=bytes_accessed,
    )

    ctx, attn = pl.pallas_call(
        kernel,
        out_shape=out_shapes,
        grid_spec=pltpu.PrefetchScalarGridSpec(
            num_scalar_prefetch=0,
            grid=(BH, nq),
            in_specs=in_specs,
            out_specs=out_specs,
        ),
        compiler_params=pltpu.CompilerParams(
            # BH axis parallel (megacore); qi axis sequential to preserve the
            # K/V residency the index_maps rely on.
            dimension_semantics=("parallel", "arbitrary"),
            vmem_limit_bytes=_vmem_limit_bytes(footprint, capacity),
        ),
        cost_estimate=cost,
    )(*args)

    return ctx.reshape(B, H, Lq, Dv), attn.reshape(B, H, Lq, Lk)


# ---------------------------------------------------------------------------
# Reference + test
# ---------------------------------------------------------------------------

def _reference(q, k, v, mask=None):
    d_k = q.shape[-1]
    scores = jnp.einsum("bhqd,bhdk->bhqk", q, k) / (d_k ** 0.5)
    if mask is not None:
        scores = jnp.where(mask, -1e9, scores)
    attn = jax.nn.softmax(scores, axis=-1)
    ctx = jnp.einsum("bhqk,bhkd->bhqd", attn, v)
    return ctx, attn


if __name__ == "__main__":
    key = jax.random.PRNGKey(0)

    # --- small shapes matching the module spec ---
    B, H, Lq, Lk, Dk, Dv = 2, 2, 8, 8, 16, 16
    kq, kk, kv, km, k2 = jax.random.split(key, 5)
    q = jax.random.normal(kq, (B, H, Lq, Dk), dtype=jnp.float32)
    k = jax.random.normal(kk, (B, H, Dk, Lk), dtype=jnp.float32)
    v = jax.random.normal(kv, (B, H, Lk, Dv), dtype=jnp.float32)
    mask = jax.random.bernoulli(km, 0.25, (B, H, Lq, Lk))

    # no-mask path
    ctx0, attn0 = scaled_dot_product_attention(q, k, v)
    jax.block_until_ready((ctx0, attn0))
    rctx0, rattn0 = _reference(q, k, v)
    assert jnp.allclose(ctx0, rctx0, atol=1e-5, rtol=1e-5)
    assert jnp.allclose(attn0, rattn0, atol=1e-5, rtol=1e-5)

    # masked path (bool mask passed through untouched)
    ctx1, attn1 = scaled_dot_product_attention(q, k, v, mask)
    jax.block_until_ready((ctx1, attn1))
    rctx1, rattn1 = _reference(q, k, v, mask)
    assert jnp.allclose(ctx1, rctx1, atol=1e-5, rtol=1e-5)
    assert jnp.allclose(attn1, rattn1, atol=1e-5, rtol=1e-5)

    # --- larger shape: default tiling (single big q tile within VMEM budget) ---
    B2, H2, Lq2, Lk2, Dk2, Dv2 = 1, 2, 512, 128, 64, 64
    kq2, kk2, kv2, km2 = jax.random.split(k2, 4)
    q2 = jax.random.normal(kq2, (B2, H2, Lq2, Dk2), dtype=jnp.float32)
    k2_ = jax.random.normal(kk2, (B2, H2, Dk2, Lk2), dtype=jnp.float32)
    v2 = jax.random.normal(kv2, (B2, H2, Lk2, Dv2), dtype=jnp.float32)
    mask2 = jax.random.bernoulli(km2, 0.25, (B2, H2, Lq2, Lk2))
    rctx2, rattn2 = _reference(q2, k2_, v2, mask2)

    ctx2, attn2 = scaled_dot_product_attention(q2, k2_, v2, mask2)
    jax.block_until_ready((ctx2, attn2))
    assert jnp.allclose(ctx2, rctx2, atol=1e-2, rtol=1e-2)
    assert jnp.allclose(attn2, rattn2, atol=1e-2, rtol=1e-2)

    # --- forced multi-q-tile path (4 grid steps along qi, K/V resident) ---
    ctx3, attn3 = scaled_dot_product_attention(q2, k2_, v2, mask2, q_tile=128)
    jax.block_until_ready((ctx3, attn3))
    assert jnp.allclose(ctx3, rctx3 if False else rctx2, atol=1e-2, rtol=1e-2)
    assert jnp.allclose(attn3, rattn2, atol=1e-2, rtol=1e-2)

    # --- bf16 MXU path for f32 inputs (v6e/v7x fast path), loose tolerance ---
    ctx4, attn4 = scaled_dot_product_attention(q2, k2_, v2, mask2,
                                               allow_bf16_matmul=True)
    jax.block_until_ready((ctx4, attn4))
    assert jnp.allclose(ctx4, rctx2, atol=1e-1, rtol=1e-1)
    assert jnp.allclose(attn4, rattn2, atol=1e-1, rtol=1e-1)

    print("KERNEL_OK")
</pallas_src>

<mosaic_0001>
module attributes {stable_mosaic.version = 11 : i64} {
  func.func @_sdpa_kernel_nomask(%arg0: i32, %arg1: i32, %arg2: memref<1x8x16xf32, #tpu.memory_space<vmem>>, %arg3: memref<1x16x8xf32, #tpu.memory_space<vmem>>, %arg4: memref<1x8x16xf32, #tpu.memory_space<vmem>>, %arg5: memref<1x8x16xf32, #tpu.memory_space<vmem>>, %arg6: memref<1x8x8xf32, #tpu.memory_space<vmem>>) attributes {dimension_semantics = [#tpu.dimension_semantics<parallel>, #tpu.dimension_semantics<arbitrary>], iteration_bounds = array<i64: 4, 1>, scalar_prefetch = 0 : i64, scratch_operands = 0 : i64, tpu.core_type = #tpu.core_type<tc>, window_params = [{transform_indices = @transform_0, window_bounds = array<i64: 1, 8, 16>}, {transform_indices = @transform_1, window_bounds = array<i64: 1, 16, 8>}, {transform_indices = @transform_2, window_bounds = array<i64: 1, 8, 16>}, {transform_indices = @transform_3, window_bounds = array<i64: 1, 8, 16>}, {transform_indices = @transform_4, window_bounds = array<i64: 1, 8, 8>}]} {
    %c0 = arith.constant 0 : index
    %c0_0 = arith.constant 0 : index
    %c0_1 = arith.constant 0 : index
    %0 = vector.load %arg2[%c0, %c0_0, %c0_1] : memref<1x8x16xf32, #tpu.memory_space<vmem>>, vector<1x8x16xf32>
    %1 = vector.shape_cast %0 : vector<1x8x16xf32> to vector<8x16xf32>
    %c0_2 = arith.constant 0 : index
    %c0_3 = arith.constant 0 : index
    %c0_4 = arith.constant 0 : index
    %2 = vector.load %arg3[%c0_2, %c0_3, %c0_4] : memref<1x16x8xf32, #tpu.memory_space<vmem>>, vector<1x16x8xf32>
    %3 = vector.shape_cast %2 : vector<1x16x8xf32> to vector<16x8xf32>
    %c0_5 = arith.constant 0 : index
    %c0_6 = arith.constant 0 : index
    %c0_7 = arith.constant 0 : index
    %4 = vector.load %arg4[%c0_5, %c0_6, %c0_7] : memref<1x8x16xf32, #tpu.memory_space<vmem>>, vector<1x8x16xf32>
    %5 = vector.shape_cast %4 : vector<1x8x16xf32> to vector<8x16xf32>
    %cst = arith.constant 2.500000e-01 : f32
    %6 = vector.broadcast %cst : f32 to vector<8x16xf32>
    %7 = arith.mulf %1, %6 : vector<8x16xf32>
    %cst_8 = arith.constant dense<0.000000e+00> : vector<8x8xf32>
    %8 = tpu.matmul %7, %3, %cst_8 {dimension_numbers = #tpu.dot_dimension_numbers<[1], [0], [0], [1], [0, 0, 1, 1], [], []>} : vector<8x16xf32>, vector<16x8xf32>, vector<8x8xf32> -> vector<8x8xf32>
    %cst_9 = arith.constant dense<0xFF800000> : vector<8xf32>
    %9 = vector.multi_reduction <maximumf>, %8, %cst_9 [1] : vector<8x8xf32> to vector<8xf32>
    %10 = vector.shape_cast %9 : vector<8xf32> to vector<8x1xf32>
    %11 = vector.broadcast %10 : vector<8x1xf32> to vector<8x8xf32>
    %12 = arith.subf %8, %11 : vector<8x8xf32>
    %13 = math.exp %12 : vector<8x8xf32>
    %cst_10 = arith.constant dense<0.000000e+00> : vector<8xf32>
    %14 = vector.multi_reduction <add>, %13, %cst_10 [1] : vector<8x8xf32> to vector<8xf32>
    %15 = vector.shape_cast %14 : vector<8xf32> to vector<8x1xf32>
    %16 = tpu.reciprocal %15 : vector<8x1xf32> -> vector<8x1xf32>
    %17 = vector.broadcast %16 : vector<8x1xf32> to vector<8x8xf32>
    %18 = arith.mulf %13, %17 : vector<8x8xf32>
    %cst_11 = arith.constant dense<0.000000e+00> : vector<8x16xf32>
    %19 = tpu.matmul %18, %5, %cst_11 {dimension_numbers = #tpu.dot_dimension_numbers<[1], [0], [0], [1], [0, 0, 1, 1], [], []>} : vector<8x8xf32>, vector<8x16xf32>, vector<8x16xf32> -> vector<8x16xf32>
    %c0_12 = arith.constant 0 : index
    %c0_13 = arith.constant 0 : index
    %c0_14 = arith.constant 0 : index
    %20 = vector.load %arg5[%c0_12, %c0_13, %c0_14] : memref<1x8x16xf32, #tpu.memory_space<vmem>>, vector<1x8x16xf32>
    %21 = vector.shape_cast %20 : vector<1x8x16xf32> to vector<8x16xf32>
    %22 = vector.shape_cast %19 : vector<8x16xf32> to vector<1x8x16xf32>
    tpu.vector_store %arg5[%c0_12, %c0_13, %c0_14], %22 {strides = array<i32>} : memref<1x8x16xf32, #tpu.memory_space<vmem>>, vector<1x8x16xf32>,
    %c0_15 = arith.constant 0 : index
    %c0_16 = arith.constant 0 : index
    %c0_17 = arith.constant 0 : index
    %23 = vector.load %arg6[%c0_15, %c0_16, %c0_17] : memref<1x8x8xf32, #tpu.memory_space<vmem>>, vector<1x8x8xf32>
    %24 = vector.shape_cast %23 : vector<1x8x8xf32> to vector<8x8xf32>
    %25 = vector.shape_cast %18 : vector<8x8xf32> to vector<1x8x8xf32>
    tpu.vector_store %arg6[%c0_15, %c0_16, %c0_17], %25 {strides = array<i32>} : memref<1x8x8xf32, #tpu.memory_space<vmem>>, vector<1x8x8xf32>,
    return
  }
  func.func @transform_0(%arg0: i32, %arg1: i32) -> (i32, i32, i32) {
    %c0_i32 = arith.constant 0 : i32
    %c0_i32_0 = arith.constant 0 : i32
    return %arg0, %arg1, %c0_i32 : i32, i32, i32
  }
  func.func @transform_1(%arg0: i32, %arg1: i32) -> (i32, i32, i32) {
    %c0_i32 = arith.constant 0 : i32
    %c0_i32_0 = arith.constant 0 : i32
    %c0_i32_1 = arith.constant 0 : i32
    return %arg0, %c0_i32, %c0_i32_0 : i32, i32, i32
  }
  func.func @transform_2(%arg0: i32, %arg1: i32) -> (i32, i32, i32) {
    %c0_i32 = arith.constant 0 : i32
    %c0_i32_0 = arith.constant 0 : i32
    %c0_i32_1 = arith.constant 0 : i32
    return %arg0, %c0_i32, %c0_i32_0 : i32, i32, i32
  }
  func.func @transform_3(%arg0: i32, %arg1: i32) -> (i32, i32, i32) {
    %c0_i32 = arith.constant 0 : i32
    %c0_i32_0 = arith.constant 0 : i32
    return %arg0, %arg1, %c0_i32 : i32, i32, i32
  }
  func.func @transform_4(%arg0: i32, %arg1: i32) -> (i32, i32, i32) {
    %c0_i32 = arith.constant 0 : i32
    %c0_i32_0 = arith.constant 0 : i32
    return %arg0, %arg1, %c0_i32 : i32, i32, i32
  }
}

</mosaic_0001>

<llo_original>
// kernel: tpu_custom_call.1
$region0: #{tpu_custom_call.1}
  #allocation0 [shape = 'u32[]', space=smem, size = 0x4, offset = 0x4, fixed_abs, tag = 'smem constant byte address 0x4 - core index']
  #allocation1 [shape = 'u32[72,128]{1,0:T(1,128)}', space=vmem, size = 0x9000, scoped, tag = 'internal scratch']
  %s0 = inlined_call_operand.vmem [shape: f32[4,8,16], index: 0, kind: input, shape index: {}]
  %s1 = inlined_call_operand.vmem [shape: f32[4,16,8], index: 1, kind: input, shape index: {}]
  %s2 = inlined_call_operand.vmem [shape: f32[4,8,16], index: 2, kind: input, shape index: {}]
  %s3 = inlined_call_operand.hbm [shape: f32[4,8,16], index: 3, kind: output, shape index: {0}]
  %s4 = inlined_call_operand.hbm [shape: f32[4,8,8], index: 4, kind: output, shape index: {1}]
  %5 = xla_tuple %s3, %s4
  %s6 = sld [smem:[#allocation0]]
  $region53: #{tpu_custom_call.1} parent=0
    _
  %s8 = ssub.s32 1, %s6
  %s9 = scalar_select 0, %s8, %s6
  $region1: #{tpu_custom_call.1} parent=0
    #allocation2 [shape = 'u8[8192]{0}', space=vmem, size = 0x2000, scoped, tag = 'output window, operand 0']
    #allocation3 [shape = 's32[2]{0}', space=sflag, size = 0x8, scoped, tag = 'scoped memory for tpu_custom_call.1']
    #allocation4 [shape = 'u8[8192]{0}', space=vmem, size = 0x2000, scoped, tag = 'output window, operand 1']
    #allocation5 [shape = 's32[2]{0}', space=sflag, size = 0x8, scoped, tag = 'scoped memory for tpu_custom_call.1']
    %10 = vsyncpa [#allocation3], 0
    %s11 = scalar_lea.sflag [#allocation3], 1
    %12 = vsyncpa %s11, 0
    %13 = vsyncpa [#allocation5], 0
    %s14 = scalar_lea.sflag [#allocation5], 1
    %15 = vsyncpa %s14, 0
    loop: start=0, step=1, limit=6
    $region2: #{tpu_custom_call.1} parent=1 // loop_pre_header
      _
    $region3: #{tpu_custom_call.1} parent=1 // loop_header
      %s17 = sphi 0, %s21
      %p18 = scmp.ge.s32.totalorder %s17, 6
      %s24 = sphi 0, %s36
      %s25 = sphi 0, %s32
      %s26 = sphi 0, %s24
      %s27 = sphi 0, %s25
      %s28 = sphi 0, %s26
      %s29 = sphi 0, %s27
      %s41 = sphi 0, %s43
      %s44 = sphi 0, %s41
      %s45 = sphi 0, %s44
      %s61 = sphi 0, %s45
      %s67 = sphi 0, %s69
      %s70 = sphi 0, %s67
      %s71 = sphi 0, %s70
      %s87 = sphi 0, %s71
      %s93 = sphi 0, %s95
      %s96 = sphi 0, %s93
      %s97 = sphi 0, %s96
      %s113 = sphi 0, %s97
      %s121 = sphi 0, %s123
      %s124 = sphi 0, %s121
      %s125 = sphi 0, %s124
      %s141 = sphi 0, %s125
      %s149 = sphi 0, %s151
      %s152 = sphi 0, %s149
      %s153 = sphi 0, %s152
      %s169 = sphi 0, %s153
    $region4: #{tpu_custom_call.1} parent=1 // loop_header_branch
      %20 = sbr.rel (%p18) target = $region8
    $region5: #{tpu_custom_call.1} parent=1 // loop_body
      %s22 = ssub.s32 %s17, 1
      %s23 = ssub.s32 %s17, 2
      %s30 = sadd.s32 1, %s25
      %p31 = scmp.ge.s32.totalorder %s30, 1
      %s32 = scalar_select %p31, 0, %s30
      %s33 = sadd.s32 1, %s24
      %s34 = scalar_select %p31, %s33, %s24
      %p35 = scmp.ge.s32.totalorder %s34, 4
      %s36 = scalar_select %p35, 0, %s34
      %s37 = ssub.s32 %s24, %s36
      %s38 = ssub.s32 %s25, %s32
      %s39 = sor.u32 %s37, %s38
      %p40 = scmp.eq.s32.totalorder %s39, 0
      %s42 = sadd.s32 %s41, 1
      %s43 = scalar_select %p40, %s41, %s42
      %p46 = pneg %p40
      %p47 = scmp.eq.s32.totalorder %s17, 3
      %p48 = por %p46, %p47
      %p49 = scmp.ne.s32.totalorder %s41, %s44
      %p50 = scmp.eq.s32.totalorder %s17, 0
      %p51 = por %p49, %p50
      %p52 = scmp.ne.s32.totalorder %s41, %s44
      %p53 = scmp.eq.s32.totalorder %s22, 3
      %p54 = por %p52, %p53
      %p55 = scmp.ne.s32.totalorder %s44, %s45
      %p56 = scmp.eq.s32.totalorder %s22, 0
      %p57 = por %p55, %p56
      %p58 = scmp.ne.s32.totalorder %s44, %s45
      %p59 = scmp.eq.s32.totalorder %s23, 3
      %p60 = por %p58, %p59
      %p62 = scmp.ne.s32.totalorder %s45, %s61
      %p63 = scmp.eq.s32.totalorder %s23, 0
      %p64 = por %p62, %p63
      %s65 = ssub.s32 %s24, %s36
      %p66 = scmp.eq.s32.totalorder %s65, 0
      %s68 = sadd.s32 %s67, 1
      %s69 = scalar_select %p66, %s67, %s68
      %p72 = pneg %p66
      %p73 = scmp.eq.s32.totalorder %s17, 3
      %p74 = por %p72, %p73
      %p75 = scmp.ne.s32.totalorder %s67, %s70
      %p76 = scmp.eq.s32.totalorder %s17, 0
      %p77 = por %p75, %p76
      %p78 = scmp.ne.s32.totalorder %s67, %s70
      %p79 = scmp.eq.s32.totalorder %s22, 3
      %p80 = por %p78, %p79
      %p81 = scmp.ne.s32.totalorder %s70, %s71
      %p82 = scmp.eq.s32.totalorder %s22, 0
      %p83 = por %p81, %p82
      %p84 = scmp.ne.s32.totalorder %s70, %s71
      %p85 = scmp.eq.s32.totalorder %s23, 3
      %p86 = por %p84, %p85
      %p88 = scmp.ne.s32.totalorder %s71, %s87
      %p89 = scmp.eq.s32.totalorder %s23, 0
      %p90 = por %p88, %p89
      %s91 = ssub.s32 %s24, %s36
      %p92 = scmp.eq.s32.totalorder %s91, 0
      %s94 = sadd.s32 %s93, 1
      %s95 = scalar_select %p92, %s93, %s94
      %p98 = pneg %p92
      %p99 = scmp.eq.s32.totalorder %s17, 3
      %p100 = por %p98, %p99
      %p101 = scmp.ne.s32.totalorder %s93, %s96
      %p102 = scmp.eq.s32.totalorder %s17, 0
      %p103 = por %p101, %p102
      %p104 = scmp.ne.s32.totalorder %s93, %s96
      %p105 = scmp.eq.s32.totalorder %s22, 3
      %p106 = por %p104, %p105
      %p107 = scmp.ne.s32.totalorder %s96, %s97
      %p108 = scmp.eq.s32.totalorder %s22, 0
      %p109 = por %p107, %p108
      %p110 = scmp.ne.s32.totalorder %s96, %s97
      %p111 = scmp.eq.s32.totalorder %s23, 3
      %p112 = por %p110, %p111
      %p114 = scmp.ne.s32.totalorder %s97, %s113
      %p115 = scmp.eq.s32.totalorder %s23, 0
      %p116 = por %p114, %p115
      %s117 = ssub.s32 %s24, %s36
      %s118 = ssub.s32 %s25, %s32
      %s119 = sor.u32 %s117, %s118
      %p120 = scmp.eq.s32.totalorder %s119, 0
      %s122 = sadd.s32 %s121, 1
      %s123 = scalar_select %p120, %s121, %s122
      %p126 = pneg %p120
      %p127 = scmp.eq.s32.totalorder %s17, 3
      %p128 = por %p126, %p127
      %p129 = scmp.ne.s32.totalorder %s121, %s124
      %p130 = scmp.eq.s32.totalorder %s17, 0
      %p131 = por %p129, %p130
      %p132 = scmp.ne.s32.totalorder %s121, %s124
      %p133 = scmp.eq.s32.totalorder %s22, 3
      %p134 = por %p132, %p133
      %p135 = scmp.ne.s32.totalorder %s124, %s125
      %p136 = scmp.eq.s32.totalorder %s22, 0
      %p137 = por %p135, %p136
      %p138 = scmp.ne.s32.totalorder %s124, %s125
      %p139 = scmp.eq.s32.totalorder %s23, 3
      %p140 = por %p138, %p139
      %p142 = scmp.ne.s32.totalorder %s125, %s141
      %p143 = scmp.eq.s32.totalorder %s23, 0
      %p144 = por %p142, %p143
      %s145 = ssub.s32 %s24, %s36
      %s146 = ssub.s32 %s25, %s32
      %s147 = sor.u32 %s145, %s146
      %p148 = scmp.eq.s32.totalorder %s147, 0
      %s150 = sadd.s32 %s149, 1
      %s151 = scalar_select %p148, %s149, %s150
      %p154 = pneg %p148
      %p155 = scmp.eq.s32.totalorder %s17, 3
      %p156 = por %p154, %p155
      %p157 = scmp.ne.s32.totalorder %s149, %s152
      %p158 = scmp.eq.s32.totalorder %s17, 0
      %p159 = por %p157, %p158
      %p160 = scmp.ne.s32.totalorder %s149, %s152
      %p161 = scmp.eq.s32.totalorder %s22, 3
      %p162 = por %p160, %p161
      %p163 = scmp.ne.s32.totalorder %s152, %s153
      %p164 = scmp.eq.s32.totalorder %s22, 0
      %p165 = por %p163, %p164
      %p166 = scmp.ne.s32.totalorder %s152, %s153
      %p167 = scmp.eq.s32.totalorder %s23, 3
      %p168 = por %p166, %p167
      %p170 = scmp.ne.s32.totalorder %s153, %s169
      %p171 = scmp.eq.s32.totalorder %s23, 0
      %p172 = por %p170, %p171
      %p173 = scmp.le.s32.totalorder 1, %s17
      %p174 = scmp.lt.s32.totalorder %s17, 5
      %p175 = pnand %p173, %p174
      %p176 = pneg %p175
      // Predicated region
      $region9: #{tpu_custom_call.1} parent=5 // pred_check
        _
      $region10: #{tpu_custom_call.1} parent=5 // pred_check_branch
        %178 = sbr.rel (%p175) target = $region12
      $region11: #{tpu_custom_call.1} parent=5 // pred_region
        %s179 = ssub.s32 %s17, 1
      $region12: #{tpu_custom_call.1} parent=5 // pred_fallthru
        _
      %p180 = scmp.lt.s32.totalorder %s17, 4
      // Predicated region
      $region13: #{tpu_custom_call.1} parent=5 // pred_check
        %p181 = pneg %p180
      $region14: #{tpu_custom_call.1} parent=5 // pred_check_branch
        %183 = sbr.rel (%p181) target = $region16
      $region15: #{tpu_custom_call.1} parent=5 // pred_region
        // Predicated region
        $region17: #{tpu_custom_call.1} parent=15 // pred_check
          %p184 = pneg %p51
        $region18: #{tpu_custom_call.1} parent=15 // pred_check_branch
          %186 = sbr.rel (%p184) target = $region20
        $region19: #{tpu_custom_call.1} parent=15 // pred_region
          %p187 = scmp.lt.s32.totalorder %s24, 3
          %s188 = scalar_select %p187, %s24, 3
          %p189 = scmp.lt.s32.totalorder %s25, 0
          %s190 = scalar_select %p189, %s25, 0
          %s191 = sadd.s32 %s190, %s188
          %s192 = smul.addr %s191, 8
          %s193 = scalar_lea.vmem %s0, %s192
        $region20: #{tpu_custom_call.1} parent=15 // pred_fallthru
          _
        // Predicated region
        $region21: #{tpu_custom_call.1} parent=15 // pred_check
          %p194 = pneg %p77
        $region22: #{tpu_custom_call.1} parent=15 // pred_check_branch
          %196 = sbr.rel (%p194) target = $region24
        $region23: #{tpu_custom_call.1} parent=15 // pred_region
          %p197 = scmp.lt.s32.totalorder %s24, 3
          %s198 = scalar_select %p197, %s24, 3
          %s199 = smul.addr %s198, 2
          %s200 = smul.addr %s199, 8
          %s201 = scalar_lea.vmem %s1, %s200
        $region24: #{tpu_custom_call.1} parent=15 // pred_fallthru
          _
        // Predicated region
        $region25: #{tpu_custom_call.1} parent=15 // pred_check
          %p202 = pneg %p103
        $region26: #{tpu_custom_call.1} parent=15 // pred_check_branch
          %204 = sbr.rel (%p202) target = $region28
        $region27: #{tpu_custom_call.1} parent=15 // pred_region
          %p205 = scmp.lt.s32.totalorder %s24, 3
          %s206 = scalar_select %p205, %s24, 3
          %s207 = smul.addr %s206, 8
          %s208 = scalar_lea.vmem %s2, %s207
        $region28: #{tpu_custom_call.1} parent=15 // pred_fallthru
          _
      $region16: #{tpu_custom_call.1} parent=5 // pred_fallthru
        _
      %p209 = scmp.le.s32.totalorder 1, %s17
      %p210 = scmp.lt.s32.totalorder %s17, 5
      %p211 = pnand %p209, %p210
      %p212 = pneg %p211
      // Predicated region
      $region29: #{tpu_custom_call.1} parent=5 // pred_check
        _
      $region30: #{tpu_custom_call.1} parent=5 // pred_check_branch
        %214 = sbr.rel (%p211) target = $region32
      $region31: #{tpu_custom_call.1} parent=5 // pred_region
        %s215 = ssub.s32 %s17, 1
        %p216 = scmp.lt.s32.totalorder %s26, 3
        %s217 = scalar_select %p216, %s26, 3
        %p218 = scmp.lt.s32.totalorder %s27, 0
        %s219 = scalar_select %p218, %s27, 0
        %s220 = sadd.s32 %s219, %s217
        %s221 = smul.addr %s220, 8
        %s222 = scalar_lea.vmem %s0, %s221
        %p223 = pneg %p57
        %p224 = pneg %p54
        %p225 = scmp.lt.s32.totalorder %s26, 3
        %s226 = scalar_select %p225, %s26, 3
        %s227 = smul.addr %s226, 2
        %s228 = smul.addr %s227, 8
        %s229 = scalar_lea.vmem %s1, %s228
        %p230 = pneg %p83
        %p231 = pneg %p80
        %p232 = scmp.lt.s32.totalorder %s26, 3
        %s233 = scalar_select %p232, %s26, 3
        %s234 = smul.addr %s233, 8
        %s235 = scalar_lea.vmem %s2, %s234
        %p236 = pneg %p109
        %p237 = pneg %p106
        %p238 = pneg %p137
        %p239 = pneg %p134
        %s240 = sand.u32 %s124, 1
        %s241 = scalar_lea.sflag [#allocation3], %s240
        %s242 = sand.u32 %s124, 1
        %s243 = smul.addr %s242, 8
        %s244 = scalar_lea.vmem [#allocation2], %s243
        %p245 = pneg %p165
        %p246 = pneg %p162
        %s247 = sand.u32 %s152, 1
        %s248 = scalar_lea.sflag [#allocation5], %s247
        %s249 = sand.u32 %s152, 1
        %s250 = smul.addr %s249, 8
        %s251 = scalar_lea.vmem [#allocation4], %s250
        %p252 = scmp.lt.s32.totalorder %s26, 3
        %s253 = scalar_select %p252, %s26, 3
        %p254 = scmp.lt.s32.totalorder %s27, 0
        %s255 = scalar_select %p254, %s27, 0
        %s256 = sadd.s32 %s255, %s253
        %s257 = smul.addr %s256, 8
        %s258 = scalar_lea.vmem %s0, %s257
        %p259 = scmp.lt.s32.totalorder %s26, 3
        %s260 = scalar_select %p259, %s26, 3
        %s261 = smul.addr %s260, 2
        %s262 = smul.addr %s261, 8
        %s263 = scalar_lea.vmem %s1, %s262
        %p264 = scmp.lt.s32.totalorder %s26, 3
        %s265 = scalar_select %p264, %s26, 3
        %s266 = smul.addr %s265, 8
        %s267 = scalar_lea.vmem %s2, %s266
        %v268 = vld [vmem:[%s258] sm:$0xff]
        %v269 = vld [vmem:[%s263] sm:$0xff]
        %v270 = vld [vmem:[%s263 + $0x8] sm:$0xff]
        %v271 = vld [vmem:[%s267] sm:$0xff]
        %v272 = vmul.f32 %v268, 0.25
        %vm273 = vcmask 130048
        %v275 = vsel %vm273, %v272, 0
        %277 = vmatpush.msra.mxu0 0.0
        %278 = vmatpush.msra.mxu0 0.0
        %279 = vmatpush.msra.mxu0 0.0
        %280 = vmatpush.msra.mxu0 0.0
        %281 = vmatpush.msra.mxu0 0.0
        %282 = vmatpush.msra.mxu0 0.0
        %283 = vmatpush.msra.mxu0 0.0
        %284 = vmatpush.msra.mxu0 0.0
        %285 = vmatpush.msra.mxu0 0.0
        %286 = vmatpush.msra.mxu0 0.0
        %287 = vmatpush.msra.mxu0 0.0
        %288 = vmatpush.msra.mxu0 0.0
        %289 = vmatpush.msra.mxu0 0.0
        %290 = vmatpush.msra.mxu0 0.0
        %291 = vmatpush.msra.mxu0 %v270
        %292 = vmatpush.msra.mxu0 %v269
        %293 = vmatmul.f32.gmra.mxu0 %v275
        %v294 = vpop.f32.mrf.mxu0
        %v295 = vadd.f32 0.0, %v294
        %296 = vdwg.mxu0
        %vm297 = vcmask 64512
        %v298 = vsel %vm297, %v295, -inf
        %299 = vmax.xlane.f32.xlu0 %v298
        %v300 = vpop.xlane.xlu0 %299
        %v301 = vsub.f32 %v295, %v300
        %v302 = vmul.f32 %v301, 1.442695
        %v303 = vpow.pop %v302
        %v304 = vsel %vm297, %v303, 0.0
        %305 = vadd.xlane.f32.xlu0 %v304
        %v306 = vpop.xlane.xlu0 %305
        %v307 = vrcp.pop %v306
        %v308 = vmul.f32 %v306, %v307
        %v309 = vsub.f32 1.0, %v308
        %v310 = vmul.f32 %v307, %v309
        %v311 = vadd.f32 %v307, %v310
        %vm312 = vweird.f32 %v306
        %vm313 = vweird.f32 %v307
        %vm314 = vmor %vm312, %vm313
        %v315 = vsel %vm314, %v307, %v311
        %v316 = vand.u32 2147483647, %v306
        %vm317 = vcmp.eq.f32.partialorder %v316, 8.507059e+37
        %v318 = vand.u32 %v306, 2147483648
        %v319 = vor.u32 1.1754944e-38, %v318
        %v320 = vsel %vm317, %v319, %v315
        %v321 = vmul.f32 %v303, %v320
        %v323 = vsel %vm297, %v321, 0
        %325 = vmatpush.msra.mxu0 0.0
        %326 = vmatpush.msra.mxu0 0.0
        %327 = vmatpush.msra.mxu0 0.0
        %328 = vmatpush.msra.mxu0 0.0
        %329 = vmatpush.msra.mxu0 0.0
        %330 = vmatpush.msra.mxu0 0.0
        %331 = vmatpush.msra.mxu0 0.0
        %332 = vmatpush.msra.mxu0 0.0
        %333 = vmatpush.msra.mxu0 0.0
        %334 = vmatpush.msra.mxu0 0.0
        %335 = vmatpush.msra.mxu0 0.0
        %336 = vmatpush.msra.mxu0 0.0
        %337 = vmatpush.msra.mxu0 0.0
        %338 = vmatpush.msra.mxu0 0.0
        %339 = vmatpush.msra.mxu0 0.0
        %340 = vmatpush.msra.mxu0 %v271
        %341 = vmatmul.f32.gmra.mxu0 %v323
        %v342 = vpop.f32.mrf.mxu0
        %v343 = vadd.f32 0.0, %v342
        %344 = vdwg.mxu0
        %345 = vst.msk [vmem:[%s244] sm:$0xff] %vm273, %v343
        %346 = vst.msk [vmem:[%s251] sm:$0xff] %vm297, %v321
        %s347 = sand.u32 %s124, 1
        %s348 = scalar_lea.sflag [#allocation3], %s347
        %s349 = sand.u32 %s124, 1
        %s350 = smul.addr %s349, 8
        %s351 = scalar_lea.vmem [#allocation2], %s350
        %s352 = sand.u32 %s152, 1
        %s353 = scalar_lea.sflag [#allocation5], %s352
        %s354 = sand.u32 %s152, 1
        %s355 = smul.addr %s354, 8
        %s356 = scalar_lea.vmem [#allocation4], %s355
        // Predicated region
        $region33: #{tpu_custom_call.1} parent=31 // pred_check
          %p357 = pneg %p134
        $region34: #{tpu_custom_call.1} parent=31 // pred_check_branch
          %359 = sbr.rel (%p357) target = $region36
        $region35: #{tpu_custom_call.1} parent=31 // pred_region
          %361 = vsyncadd %s348, 0
          %s362 = sadd.s32 %s27, %s26
          %s363 = smul.addr %s362, 8
          %s364 = scalar_lea.hbm %s3, %s363
          %s366 = sshll.u32 %s351, 4
          %s367 = int_to_ptr.vmem [resolvable:$true] %s366
          %s368 = sshll.u32 %s364, 4
          %s369 = int_to_ptr.hbm [resolvable:$true] %s368
          %371 = dma.vmem_to_hbm [thread:$0]  %s367, 128, %s369, %s348
        $region36: #{tpu_custom_call.1} parent=31 // pred_fallthru
          _
        // Predicated region
        $region37: #{tpu_custom_call.1} parent=31 // pred_check
          %p372 = pneg %p162
        $region38: #{tpu_custom_call.1} parent=31 // pred_check_branch
          %374 = sbr.rel (%p372) target = $region40
        $region39: #{tpu_custom_call.1} parent=31 // pred_region
          %376 = vsyncadd %s353, 0
          %s377 = sadd.s32 %s27, %s26
          %s378 = smul.addr %s377, 8
          %s379 = scalar_lea.hbm %s4, %s378
          %s381 = sshll.u32 %s356, 4
          %s382 = int_to_ptr.vmem [resolvable:$true] %s381
          %s383 = sshll.u32 %s379, 4
          %s384 = int_to_ptr.hbm [resolvable:$true] %s383
          %386 = dma.vmem_to_hbm [thread:$0]  %s382, 128, %s384, %s353
        $region40: #{tpu_custom_call.1} parent=31 // pred_fallthru
          _
      $region32: #{tpu_custom_call.1} parent=5 // pred_fallthru
        _
      %p387 = scmp.le.s32.totalorder 2, %s17
      // Predicated region
      $region41: #{tpu_custom_call.1} parent=5 // pred_check
        %p388 = pneg %p387
      $region42: #{tpu_custom_call.1} parent=5 // pred_check_branch
        %390 = sbr.rel (%p388) target = $region44
      $region43: #{tpu_custom_call.1} parent=5 // pred_region
        %s391 = ssub.s32 %s17, 2
        // Predicated region
        $region45: #{tpu_custom_call.1} parent=43 // pred_check
          %p392 = pneg %p140
        $region46: #{tpu_custom_call.1} parent=43 // pred_check_branch
          %394 = sbr.rel (%p392) target = $region48
        $region47: #{tpu_custom_call.1} parent=43 // pred_region
          %s395 = sand.u32 %s125, 1
          %s396 = scalar_lea.sflag [#allocation3], %s395
          %s397 = sand.u32 %s125, 1
          %s398 = smul.addr %s397, 8
          %s399 = scalar_lea.vmem [#allocation2], %s398
          %401 = dma.done %s396, 128
        $region48: #{tpu_custom_call.1} parent=43 // pred_fallthru
          _
        // Predicated region
        $region49: #{tpu_custom_call.1} parent=43 // pred_check
          %p402 = pneg %p168
        $region50: #{tpu_custom_call.1} parent=43 // pred_check_branch
          %404 = sbr.rel (%p402) target = $region52
        $region51: #{tpu_custom_call.1} parent=43 // pred_region
          %s405 = sand.u32 %s153, 1
          %s406 = scalar_lea.sflag [#allocation5], %s405
          %s407 = sand.u32 %s153, 1
          %s408 = smul.addr %s407, 8
          %s409 = scalar_lea.vmem [#allocation4], %s408
          %411 = dma.done %s406, 128
        $region52: #{tpu_custom_call.1} parent=43 // pred_fallthru
          _
      $region44: #{tpu_custom_call.1} parent=5 // pred_fallthru
        _
    $region6: #{tpu_custom_call.1} parent=1 // loop_footer
      %s21 = sadd.s32 1, %s17
    $region7: #{tpu_custom_call.1} parent=1 // loop_footer_branch
      %16 = sbr.rel target = $region3
    $region8: #{tpu_custom_call.1} parent=1 // loop_exit
      _
    %412 = vsyncpa [#allocation3], 1
    %s413 = scalar_lea.sflag [#allocation3], 1
    %414 = vsyncpa %s413, 1
    %415 = vsyncpa [#allocation5], 1
    %s416 = scalar_lea.sflag [#allocation5], 1
    %417 = vsyncpa %s416, 1

</llo_original>
